<compile_context>
chip_gen: v6e
topology: v6e:2x2x1
jax: 0.10.0
libtpu: 0.0.40
codegen_flags: <defaults>
</compile_context>

<pallas_src>
import math

import jax
import jax.numpy as jnp
from jax.experimental import pallas as pl
from jax.experimental.pallas import tpu as pltpu

LAYER_DIMS = [(87, 64), (64, 32), (32, 16), (16, 1)]   # (in_features, out_features)
NEG_SLOPE = 0.01
PRIOR_SIGMA = 0.1
MAX_TILE_B = 4096          # max batch rows per grid step (multiple of 128)


def _leaky_relu(x):
    # valid for 0 < slope < 1: max(x, s*x) == leaky_relu(x)
    return jnp.maximum(x, NEG_SLOPE * x)


def _round_up(v, m):
    return (v + m - 1) // m * m


def bayes_mlp_kernel(x_ref, w1, w2, w3, w4, b_ref, o_ref):
    """Fused 4-layer Bayesian MLP on one (tb, 87) batch tile, batch on lanes.

    Weights are pre-sampled in the wrapper, PyTorch (out, in) layout, and stay
    VMEM-resident across the grid. b_ref is a packed (128, 1) f32 column:
    rows [0:64)=b1, [64:96)=b2, [96:112)=b3, [112]=b4.
    Layers 1-3: bf16 MXU matmuls, f32 accumulate; layer 4 stays f32.
    All intermediates are (out_features, tb) -> lane-dense for tb % 128 == 0.
    """
    x_bf = x_ref[...].astype(jnp.bfloat16)                       # (tb, 87)

    b1 = b_ref[0:64, :]                                          # (64, 1)
    b2 = b_ref[64:96, :]                                         # (32, 1)
    b3 = b_ref[96:112, :]                                        # (16, 1)
    b4 = b_ref[112:113, :]                                       # (1, 1)

    # fc1 as NT matmul: contract the 87-feature axis of W1 and x_tile,
    # putting the batch on the N/lane axis of the result.
    h = jax.lax.dot_general(
        w1[...], x_bf,
        dimension_numbers=(((1,), (1,)), ((), ())),
        preferred_element_type=jnp.float32) + b1                 # (64, tb) f32
    h = _leaky_relu(h)

    h = jnp.dot(w2[...], h.astype(jnp.bfloat16),
                preferred_element_type=jnp.float32) + b2         # (32, tb)
    h = _leaky_relu(h)

    h = jnp.dot(w3[...], h.astype(jnp.bfloat16),
                preferred_element_type=jnp.float32) + b3         # (16, tb)
    h = _leaky_relu(h)

    y = jnp.dot(w4[...], h, preferred_element_type=jnp.float32) + b4  # (1, tb)
    o_ref[...] = y.astype(o_ref.dtype)


def _sample(mu, log_sigma, eps):
    return mu + jnp.exp(log_sigma) * eps


def _choose_tile(B):
    """Batch rows per grid step: whole batch if tiny, else >=2 lane-aligned tiles."""
    if B <= 256:
        return B
    return min(MAX_TILE_B, _round_up(-(-B // 2), 128))


@jax.jit
def bayesian_nn_forward(x, params):
    """x: (B, 87) f32; params: 24 torchbnn-layout arrays. Returns (B, 1) f32."""
    B, f_in = x.shape

    # --- hoisted reparameterization sampling (batch-invariant, tiny XLA fusion) ---
    sampled = []
    for l in range(len(LAYER_DIMS)):
        w_mu, w_ls, w_eps, b_mu, b_ls, b_eps = params[6 * l: 6 * l + 6]
        sampled.append((_sample(w_mu, w_ls, w_eps), _sample(b_mu, b_ls, b_eps)))
    (W1, B1), (W2, B2), (W3, B3), (W4, B4) = sampled

    # kernel operands: PyTorch (out, in) layout, bf16 for the MXU layers
    w1 = W1.astype(jnp.bfloat16)                    # (64, 87)
    w2 = W2.astype(jnp.bfloat16)                    # (32, 64)
    w3 = W3.astype(jnp.bfloat16)                    # (16, 32)
    w4 = W4.astype(jnp.float32)                     # (1, 16)
    # pack all biases into one lane-padded column: 64 + 32 + 16 + 1 = 113 -> 128
    b_packed = jnp.concatenate(
        [B1, B2, B3, B4, jnp.zeros((15,), jnp.float32)]
    ).astype(jnp.float32).reshape(128, 1)

    tb = _choose_tile(B)
    grid = (pl.cdiv(B, tb),)

    def resident(arr):                              # same block every grid step
        nd = arr.ndim
        return pl.BlockSpec(arr.shape, lambda i, _nd=nd: (0,) * _nd)

    out_row = pl.pallas_call(
        bayes_mlp_kernel,
        out_shape=jax.ShapeDtypeStruct((1, B), jnp.float32),
        grid=grid,
        in_specs=[
            pl.BlockSpec((tb, f_in), lambda i: (i, 0)),     # batch-tiled x
            resident(w1), resident(w2), resident(w3), resident(w4),
            resident(b_packed),
        ],
        out_specs=pl.BlockSpec((1, tb), lambda i: (0, i)),  # lane-dense output
        compiler_params=pltpu.CompilerParams(
            dimension_semantics=("parallel",),
            vmem_limit_bytes=32 * 1024 * 1024),
    )(x, w1, w2, w3, w4, b_packed)
    return out_row.reshape(B, 1)


def init_params(key):
    """Deterministic synthetic parameters, shapes matching torchbnn.BayesLinear.

    Per layer: weight_mu/log_sigma/eps (out, in), bias_mu/log_sigma/eps (out,).
    eps (normally drawn per forward) is passed explicitly so the kernel and the
    reference see the identical weight sample.
    """
    params = []
    log_sigma0 = math.log(PRIOR_SIGMA)
    for fan_in, fan_out in LAYER_DIMS:
        key, k_wmu, k_weps, k_bmu, k_beps = jax.random.split(key, 5)
        bound = 1.0 / math.sqrt(fan_in)
        w_mu = jax.random.uniform(k_wmu, (fan_out, fan_in), jnp.float32, -bound, bound)
        w_ls = jnp.full((fan_out, fan_in), log_sigma0, jnp.float32)
        w_eps = jax.random.normal(k_weps, (fan_out, fan_in), jnp.float32)
        b_mu = jax.random.uniform(k_bmu, (fan_out,), jnp.float32, -bound, bound)
        b_ls = jnp.full((fan_out,), log_sigma0, jnp.float32)
        b_eps = jax.random.normal(k_beps, (fan_out,), jnp.float32)
        params.extend([w_mu, w_ls, w_eps, b_mu, b_ls, b_eps])
    return params


def reference_forward(x, params, matmul_dtype=jnp.float32):
    """Pure-JAX reference. matmul_dtype=bfloat16 mirrors the kernel's MXU policy."""
    h = x
    n_layers = len(params) // 6
    for l in range(n_layers):
        w_mu, w_ls, w_eps, b_mu, b_ls, b_eps = params[6 * l: 6 * l + 6]
        W = w_mu + jnp.exp(w_ls) * w_eps             # (out, in)
        b = b_mu + jnp.exp(b_ls) * b_eps             # (out,)
        if l == n_layers - 1:
            h = jnp.dot(h, W.T, preferred_element_type=jnp.float32) + b[None, :]
        else:
            h = jnp.dot(h.astype(matmul_dtype), W.T.astype(matmul_dtype),
                        preferred_element_type=jnp.float32) + b[None, :]
            h = jnp.where(h >= 0, h, NEG_SLOPE * h)
    return h


if __name__ == "__main__":
    key = jax.random.PRNGKey(0)
    key_x, key_x2, key_p = jax.random.split(key, 3)
    params = init_params(key_p)

    # --- small batch: single grid step ---
    B = 8
    x = jax.random.normal(key_x, (B, LAYER_DIMS[0][0]), jnp.float32)   # (8, 87)
    out = jax.block_until_ready(bayesian_nn_forward(x, params))
    assert out.shape == (B, 1), out.shape
    ref_match = reference_forward(x, params, matmul_dtype=jnp.bfloat16)
    ref_f32 = reference_forward(x, params, matmul_dtype=jnp.float32)
    assert jnp.allclose(out, ref_match, atol=2e-3, rtol=2e-3), "mismatch vs bf16-matched reference"
    assert jnp.allclose(out, ref_f32, atol=1e-1, rtol=1e-1), "mismatch vs f32 reference"

    # --- larger, non-divisible batch: 2 grid steps + edge tile + 'parallel' axis ---
    B2 = 2085
    x2 = jax.random.normal(key_x2, (B2, LAYER_DIMS[0][0]), jnp.float32)  # (2085, 87)
    out2 = jax.block_until_ready(bayesian_nn_forward(x2, params))
    assert out2.shape == (B2, 1), out2.shape
    ref2 = reference_forward(x2, params, matmul_dtype=jnp.bfloat16)
    assert jnp.allclose(out2, ref2, atol=2e-3, rtol=2e-3), "mismatch vs reference (tiled)"

    print("KERNEL_OK")
</pallas_src>

<mosaic_0001>
module attributes {stable_mosaic.version = 11 : i64} {
  func.func @bayes_mlp_kernel(%arg0: i32, %arg1: memref<8x87xf32, #tpu.memory_space<vmem>>, %arg2: memref<64x87xbf16, #tpu.memory_space<vmem>>, %arg3: memref<32x64xbf16, #tpu.memory_space<vmem>>, %arg4: memref<16x32xbf16, #tpu.memory_space<vmem>>, %arg5: memref<1x16xf32, #tpu.memory_space<vmem>>, %arg6: memref<128x1xf32, #tpu.memory_space<vmem>>, %arg7: memref<1x8xf32, #tpu.memory_space<vmem>>) attributes {dimension_semantics = [#tpu.dimension_semantics<parallel>], iteration_bounds = array<i64: 1>, scalar_prefetch = 0 : i64, scratch_operands = 0 : i64, tpu.core_type = #tpu.core_type<tc>, window_params = [{transform_indices = @transform_0, window_bounds = array<i64: 8, 87>}, {pipeline_mode = #tpu.pipeline_mode<synchronous>, transform_indices = @transform_1, window_bounds = array<i64: 64, 87>}, {pipeline_mode = #tpu.pipeline_mode<synchronous>, transform_indices = @transform_2, window_bounds = array<i64: 32, 64>}, {pipeline_mode = #tpu.pipeline_mode<synchronous>, transform_indices = @transform_3, window_bounds = array<i64: 16, 32>}, {pipeline_mode = #tpu.pipeline_mode<synchronous>, transform_indices = @transform_4, window_bounds = array<i64: 1, 16>}, {pipeline_mode = #tpu.pipeline_mode<synchronous>, transform_indices = @transform_5, window_bounds = array<i64: 128, 1>}, {transform_indices = @transform_6, window_bounds = array<i64: 1, 8>}]} {
    %c0 = arith.constant 0 : index
    %c0_0 = arith.constant 0 : index
    %0 = vector.load %arg1[%c0, %c0_0] : memref<8x87xf32, #tpu.memory_space<vmem>>, vector<8x87xf32>
    %1 = arith.truncf %0 : vector<8x87xf32> to vector<8x87xbf16>
    %c0_1 = arith.constant 0 : index
    %c0_2 = arith.constant 0 : index
    %2 = vector.load %arg6[%c0_1, %c0_2] : memref<128x1xf32, #tpu.memory_space<vmem>>, vector<64x1xf32>
    %c64 = arith.constant 64 : index
    %c0_3 = arith.constant 0 : index
    %3 = vector.load %arg6[%c64, %c0_3] : memref<128x1xf32, #tpu.memory_space<vmem>>, vector<32x1xf32>
    %c96 = arith.constant 96 : index
    %c0_4 = arith.constant 0 : index
    %4 = vector.load %arg6[%c96, %c0_4] : memref<128x1xf32, #tpu.memory_space<vmem>>, vector<16x1xf32>
    %c112 = arith.constant 112 : index
    %c0_5 = arith.constant 0 : index
    %5 = vector.load %arg6[%c112, %c0_5] : memref<128x1xf32, #tpu.memory_space<vmem>>, vector<1x1xf32>
    %c0_6 = arith.constant 0 : index
    %c0_7 = arith.constant 0 : index
    %6 = vector.load %arg2[%c0_6, %c0_7] : memref<64x87xbf16, #tpu.memory_space<vmem>>, vector<64x87xbf16>
    %cst = arith.constant dense<0.000000e+00> : vector<64x8xf32>
    %7 = tpu.matmul %6, %1, %cst {dimension_numbers = #tpu.dot_dimension_numbers<[1], [1], [0], [0], [0, 0, 1, 0], [], []>} : vector<64x87xbf16>, vector<8x87xbf16>, vector<64x8xf32> -> vector<64x8xf32>
    %8 = vector.broadcast %2 : vector<64x1xf32> to vector<64x8xf32>
    %9 = arith.addf %7, %8 : vector<64x8xf32>
    %cst_8 = arith.constant 0.00999999977 : f32
    %10 = vector.broadcast %cst_8 : f32 to vector<64x8xf32>
    %11 = arith.mulf %10, %9 : vector<64x8xf32>
    %12 = arith.maximumf %9, %11 : vector<64x8xf32>
    %c0_9 = arith.constant 0 : index
    %c0_10 = arith.constant 0 : index
    %13 = vector.load %arg3[%c0_9, %c0_10] : memref<32x64xbf16, #tpu.memory_space<vmem>>, vector<32x64xbf16>
    %14 = arith.truncf %12 : vector<64x8xf32> to vector<64x8xbf16>
    %cst_11 = arith.constant dense<0.000000e+00> : vector<32x8xf32>
    %15 = tpu.matmul %13, %14, %cst_11 {dimension_numbers = #tpu.dot_dimension_numbers<[1], [0], [0], [1], [0, 0, 1, 1], [], []>} : vector<32x64xbf16>, vector<64x8xbf16>, vector<32x8xf32> -> vector<32x8xf32>
    %16 = vector.broadcast %3 : vector<32x1xf32> to vector<32x8xf32>
    %17 = arith.addf %15, %16 : vector<32x8xf32>
    %cst_12 = arith.constant 0.00999999977 : f32
    %18 = vector.broadcast %cst_12 : f32 to vector<32x8xf32>
    %19 = arith.mulf %18, %17 : vector<32x8xf32>
    %20 = arith.maximumf %17, %19 : vector<32x8xf32>
    %c0_13 = arith.constant 0 : index
    %c0_14 = arith.constant 0 : index
    %21 = vector.load %arg4[%c0_13, %c0_14] : memref<16x32xbf16, #tpu.memory_space<vmem>>, vector<16x32xbf16>
    %22 = arith.truncf %20 : vector<32x8xf32> to vector<32x8xbf16>
    %cst_15 = arith.constant dense<0.000000e+00> : vector<16x8xf32>
    %23 = tpu.matmul %21, %22, %cst_15 {dimension_numbers = #tpu.dot_dimension_numbers<[1], [0], [0], [1], [0, 0, 1, 1], [], []>} : vector<16x32xbf16>, vector<32x8xbf16>, vector<16x8xf32> -> vector<16x8xf32>
    %24 = vector.broadcast %4 : vector<16x1xf32> to vector<16x8xf32>
    %25 = arith.addf %23, %24 : vector<16x8xf32>
    %cst_16 = arith.constant 0.00999999977 : f32
    %26 = vector.broadcast %cst_16 : f32 to vector<16x8xf32>
    %27 = arith.mulf %26, %25 : vector<16x8xf32>
    %28 = arith.maximumf %25, %27 : vector<16x8xf32>
    %c0_17 = arith.constant 0 : index
    %c0_18 = arith.constant 0 : index
    %29 = vector.load %arg5[%c0_17, %c0_18] : memref<1x16xf32, #tpu.memory_space<vmem>>, vector<1x16xf32>
    %cst_19 = arith.constant dense<0.000000e+00> : vector<1x8xf32>
    %30 = tpu.matmul %29, %28, %cst_19 {dimension_numbers = #tpu.dot_dimension_numbers<[1], [0], [0], [1], [0, 0, 1, 1], [], []>} : vector<1x16xf32>, vector<16x8xf32>, vector<1x8xf32> -> vector<1x8xf32>
    %31 = vector.broadcast %5 : vector<1x1xf32> to vector<1x8xf32>
    %32 = arith.addf %30, %31 : vector<1x8xf32>
    %c0_20 = arith.constant 0 : index
    %c0_21 = arith.constant 0 : index
    %33 = vector.load %arg7[%c0_20, %c0_21] : memref<1x8xf32, #tpu.memory_space<vmem>>, vector<1x8xf32>
    tpu.vector_store %arg7[%c0_20, %c0_21], %32 {strides = array<i32>} : memref<1x8xf32, #tpu.memory_space<vmem>>, vector<1x8xf32>,
    return
  }
  func.func @transform_0(%arg0: i32) -> (i32, i32) {
    %c0_i32 = arith.constant 0 : i32
    %c0_i32_0 = arith.constant 0 : i32
    return %arg0, %c0_i32 : i32, i32
  }
  func.func @transform_1(%arg0: i32) -> (i32, i32) {
    %c0_i32 = arith.constant 0 : i32
    %c0_i32_0 = arith.constant 0 : i32
    %c0_i32_1 = arith.constant 0 : i32
    return %c0_i32, %c0_i32_0 : i32, i32
  }
  func.func @transform_2(%arg0: i32) -> (i32, i32) {
    %c0_i32 = arith.constant 0 : i32
    %c0_i32_0 = arith.constant 0 : i32
    %c0_i32_1 = arith.constant 0 : i32
    return %c0_i32, %c0_i32_0 : i32, i32
  }
  func.func @transform_3(%arg0: i32) -> (i32, i32) {
    %c0_i32 = arith.constant 0 : i32
    %c0_i32_0 = arith.constant 0 : i32
    %c0_i32_1 = arith.constant 0 : i32
    return %c0_i32, %c0_i32_0 : i32, i32
  }
  func.func @transform_4(%arg0: i32) -> (i32, i32) {
    %c0_i32 = arith.constant 0 : i32
    %c0_i32_0 = arith.constant 0 : i32
    %c0_i32_1 = arith.constant 0 : i32
    return %c0_i32, %c0_i32_0 : i32, i32
  }
  func.func @transform_5(%arg0: i32) -> (i32, i32) {
    %c0_i32 = arith.constant 0 : i32
    %c0_i32_0 = arith.constant 0 : i32
    %c0_i32_1 = arith.constant 0 : i32
    return %c0_i32, %c0_i32_0 : i32, i32
  }
  func.func @transform_6(%arg0: i32) -> (i32, i32) {
    %c0_i32 = arith.constant 0 : i32
    %c0_i32_0 = arith.constant 0 : i32
    return %c0_i32, %arg0 : i32, i32
  }
}

</mosaic_0001>

<llo_original>
// kernel: bayesian_nn_forward.1
$region0: #{bayesian_nn_forward.1}
  #allocation0 [shape = 'u32[]', space=smem, size = 0x4, offset = 0x4, fixed_abs, tag = 'smem constant byte address 0x4 - core index']
  #allocation1 [shape = 'u32[144,128]{1,0:T(1,128)}', space=vmem, size = 0x12000, scoped, tag = 'internal scratch']
  %s0 = inlined_call_operand.vmem [shape: f32[8,87], index: 0, kind: input, shape index: {}]
  %s1 = inlined_call_operand.vmem [shape: bf16[64,87], index: 1, kind: input, shape index: {}]
  %s2 = inlined_call_operand.vmem [shape: bf16[32,64], index: 2, kind: input, shape index: {}]
  %s3 = inlined_call_operand.vmem [shape: bf16[16,32], index: 3, kind: input, shape index: {}]
  %s4 = inlined_call_operand.vmem [shape: f32[1,16], index: 4, kind: input, shape index: {}]
  %s5 = inlined_call_operand.vmem [shape: f32[128,1], index: 5, kind: input, shape index: {}]
  %s6 = inlined_call_operand.hbm [shape: f32[1,8], index: 6, kind: output, shape index: {}]
  %s7 = sld [smem:[#allocation0]]
  $region34: #{bayesian_nn_forward.1} parent=0
    _
  %s9 = ssub.s32 1, %s7
  %s10 = scalar_select 0, %s9, %s7
  $region1: #{bayesian_nn_forward.1} parent=0
    #allocation2 [shape = 'u8[512]{0}', space=vmem, size = 0x400, scoped, tag = 'output window, operand 0, single buffered']
    #allocation3 [shape = 's32[1]{0}', space=sflag, size = 0x4, scoped, tag = 'scoped memory for bayesian_nn_forward.1']
    %11 = vsyncpa [#allocation3], 0
    // Predicated region
    $region2: #{bayesian_nn_forward.1} parent=1 // pred_check
      _
    $region3: #{bayesian_nn_forward.1} parent=1 // pred_check_branch
      %13 = sbr.rel (0) target = $region5
    $region4: #{bayesian_nn_forward.1} parent=1 // pred_region
      _
    $region5: #{bayesian_nn_forward.1} parent=1 // pred_fallthru
      _
    // Predicated region
    $region6: #{bayesian_nn_forward.1} parent=1 // pred_check
      _
    $region7: #{bayesian_nn_forward.1} parent=1 // pred_check_branch
      %15 = sbr.rel (0) target = $region9
    $region8: #{bayesian_nn_forward.1} parent=1 // pred_region
      _
    $region9: #{bayesian_nn_forward.1} parent=1 // pred_fallthru
      _
    // Predicated region
    $region10: #{bayesian_nn_forward.1} parent=1 // pred_check
      _
    $region11: #{bayesian_nn_forward.1} parent=1 // pred_check_branch
      %17 = sbr.rel (0) target = $region13
    $region12: #{bayesian_nn_forward.1} parent=1 // pred_region
      _
    $region13: #{bayesian_nn_forward.1} parent=1 // pred_fallthru
      _
    // Predicated region
    $region14: #{bayesian_nn_forward.1} parent=1 // pred_check
      _
    $region15: #{bayesian_nn_forward.1} parent=1 // pred_check_branch
      %19 = sbr.rel (0) target = $region17
    $region16: #{bayesian_nn_forward.1} parent=1 // pred_region
      _
    $region17: #{bayesian_nn_forward.1} parent=1 // pred_fallthru
      _
    // Predicated region
    $region18: #{bayesian_nn_forward.1} parent=1 // pred_check
      _
    $region19: #{bayesian_nn_forward.1} parent=1 // pred_check_branch
      %21 = sbr.rel (0) target = $region21
    $region20: #{bayesian_nn_forward.1} parent=1 // pred_region
      _
    $region21: #{bayesian_nn_forward.1} parent=1 // pred_fallthru
      _
    // Predicated region
    $region22: #{bayesian_nn_forward.1} parent=1 // pred_check
      _
    $region23: #{bayesian_nn_forward.1} parent=1 // pred_check_branch
      %23 = sbr.rel (0) target = $region25
    $region24: #{bayesian_nn_forward.1} parent=1 // pred_region
      _
    $region25: #{bayesian_nn_forward.1} parent=1 // pred_fallthru
      _
    %v25 = vld [vmem:[%s0] sm:$0xff]
    %v26 = vpack.c.bf16 %v25, %v25
    %v27 = vld [vmem:[%s5] sm:$0xff]
    %v28 = vld [vmem:[%s5 + $0x8] sm:$0xff]
    %v29 = vld [vmem:[%s5 + $0x10] sm:$0xff]
    %v30 = vld [vmem:[%s5 + $0x18] sm:$0xff]
    %v31 = vld [vmem:[%s5 + $0x20] sm:$0xff]
    %v32 = vld [vmem:[%s5 + $0x28] sm:$0xff]
    %v33 = vld [vmem:[%s5 + $0x30] sm:$0xff]
    %v34 = vld [vmem:[%s5 + $0x38] sm:$0xff]
    %v35 = vld [vmem:[%s5 + $0x40] sm:$0xff]
    %v36 = vld [vmem:[%s5 + $0x48] sm:$0xff]
    %v37 = vld [vmem:[%s5 + $0x50] sm:$0xff]
    %v38 = vld [vmem:[%s5 + $0x58] sm:$0xff]
    %v39 = vld [vmem:[%s5 + $0x60] sm:$0xff]
    %v40 = vld [vmem:[%s5 + $0x68] sm:$0xff]
    %v41 = vld [vmem:[%s5 + $0x70] sm:$0x1]
    %v42 = vld [vmem:[%s1] sm:$0xf]
    %v43 = vld [vmem:[%s1 + $0x4] sm:$0xf]
    %v44 = vld [vmem:[%s1 + $0x8] sm:$0xf]
    %v45 = vld [vmem:[%s1 + $0xc] sm:$0xf]
    %v46 = vld [vmem:[%s1 + $0x10] sm:$0xf]
    %v47 = vld [vmem:[%s1 + $0x14] sm:$0xf]
    %v48 = vld [vmem:[%s1 + $0x18] sm:$0xf]
    %v49 = vld [vmem:[%s1 + $0x1c] sm:$0xf]
    %51 = vset.pattern.permute.xlu0 0
    %52 = vperm.xlu0 %51, %v27
    %v53 = vpop.permute.xlu0 %52
    %56 = vset.pattern.permute.xlu0 0
    %57 = vperm.xlu0 %56, %v28
    %v58 = vpop.permute.xlu0 %57
    %61 = vset.pattern.permute.xlu0 0
    %62 = vperm.xlu0 %61, %v29
    %v63 = vpop.permute.xlu0 %62
    %66 = vset.pattern.permute.xlu0 0
    %67 = vperm.xlu0 %66, %v30
    %v68 = vpop.permute.xlu0 %67
    %71 = vset.pattern.permute.xlu0 0
    %72 = vperm.xlu0 %71, %v31
    %v73 = vpop.permute.xlu0 %72
    %76 = vset.pattern.permute.xlu0 0
    %77 = vperm.xlu0 %76, %v32
    %v78 = vpop.permute.xlu0 %77
    %81 = vset.pattern.permute.xlu0 0
    %82 = vperm.xlu0 %81, %v33
    %v83 = vpop.permute.xlu0 %82
    %86 = vset.pattern.permute.xlu0 0
    %87 = vperm.xlu0 %86, %v34
    %v88 = vpop.permute.xlu0 %87
    %v98 = vunpack.c.l.b16 %v42
    %v99 = vunpack.c.l.b16 %v43
    %v100 = vunpack.c.l.b16 %v44
    %v101 = vunpack.c.l.b16 %v45
    %v102 = vunpack.c.l.b16 %v46
    %v103 = vunpack.c.l.b16 %v47
    %v104 = vunpack.c.l.b16 %v48
    %v105 = vunpack.c.l.b16 %v49
    %v106 = vpack.c.b16 %v99, %v98
    %v107 = vpack.c.b16 %v101, %v100
    %v108 = vpack.c.b16 %v103, %v102
    %v109 = vpack.c.b16 %v105, %v104
    %vm110 = vcmask 711680
    %v112 = vsel %vm110, %v106, 0
    %v115 = vsel %vm110, %v107, 0
    %v118 = vsel %vm110, %v108, 0
    %v121 = vsel %vm110, %v109, 0
    %v124 = vsel %vm110, %v26, 0
    %126 = vmatprep.subr.bf16.mxu0 0
    %127 = vmatpush1.bf16.xpose.msra.mxu0 0
    %128 = vmatprep.subr.bf16.mxu0 0
    %129 = vmatpush1.bf16.xpose.msra.mxu0 0
    %130 = vmatprep.subr.bf16.mxu0 0
    %131 = vmatpush1.bf16.xpose.msra.mxu0 0
    %132 = vmatprep.subr.bf16.mxu0 0
    %133 = vmatpush1.bf16.xpose.msra.mxu0 0
    %134 = vmatprep.subr.bf16.mxu0 0
    %135 = vmatpush1.bf16.xpose.msra.mxu0 0
    %136 = vmatprep.subr.bf16.mxu0 0
    %137 = vmatpush1.bf16.xpose.msra.mxu0 0
    %138 = vmatprep.subr.bf16.mxu0 0
    %139 = vmatpush1.bf16.xpose.msra.mxu0 0
    %140 = vmatprep.subr.bf16.mxu0 0
    %141 = vmatpush1.bf16.xpose.msra.mxu0 %v124
    %142 = vmatprep.subr.bf16.mxu0 0
    %143 = vmatpush2.bf16.xpose.msra.mxu0 0
    %144 = vmatprep.subr.bf16.mxu0 0
    %145 = vmatpush2.bf16.xpose.msra.mxu0 0
    %146 = vmatprep.subr.bf16.mxu0 0
    %147 = vmatpush2.bf16.xpose.msra.mxu0 0
    %148 = vmatprep.subr.bf16.mxu0 0
    %149 = vmatpush2.bf16.xpose.msra.mxu0 0
    %150 = vmatprep.subr.bf16.mxu0 0
    %151 = vmatpush2.bf16.xpose.msra.mxu0 0
    %152 = vmatprep.subr.bf16.mxu0 0
    %153 = vmatpush2.bf16.xpose.msra.mxu0 0
    %154 = vmatprep.subr.bf16.mxu0 0
    %155 = vmatpush2.bf16.xpose.msra.mxu0 0
    %156 = vmatprep.subr.bf16.mxu0 0
    %157 = vmatpush2.bf16.xpose.msra.mxu0 0
    %158 = vmatprep.mubr.bf16.mxu0 0
    %159 = vmatmul.mubr.bf16.gmra.mxu0 %v112
    %v160 = vpop.f32.mrf.mxu0
    %v161 = vadd.f32 %v53, %v160
    %v162 = vpop.f32.mrf.mxu0
    %v163 = vpop.f32.mrf.mxu0
    %v164 = vadd.f32 %v58, %v163
    %v165 = vpop.f32.mrf.mxu0
    %166 = vmatprep.mubr.bf16.mxu0 0
    %167 = vmatmul.mubr.bf16.gmra.mxu0 %v115
    %v168 = vpop.f32.mrf.mxu0
    %v169 = vadd.f32 %v63, %v168
    %v170 = vpop.f32.mrf.mxu0
    %v171 = vpop.f32.mrf.mxu0
    %v172 = vadd.f32 %v68, %v171
    %v173 = vpop.f32.mrf.mxu0
    %174 = vmatprep.mubr.bf16.mxu0 0
    %175 = vmatmul.mubr.bf16.gmra.mxu0 %v118
    %v176 = vpop.f32.mrf.mxu0
    %v177 = vadd.f32 %v73, %v176
    %v178 = vpop.f32.mrf.mxu0
    %v179 = vpop.f32.mrf.mxu0
    %v180 = vadd.f32 %v78, %v179
    %v181 = vpop.f32.mrf.mxu0
    %182 = vmatprep.mubr.bf16.mxu0 0
    %183 = vmatmul.mubr.bf16.gmra.mxu0 %v121
    %v184 = vpop.f32.mrf.mxu0
    %v185 = vadd.f32 %v83, %v184
    %v186 = vpop.f32.mrf.mxu0
    %v187 = vpop.f32.mrf.mxu0
    %v188 = vadd.f32 %v88, %v187
    %v189 = vpop.f32.mrf.mxu0
    %190 = vdwg.mxu0
    %v191 = vmul.f32 %v161, 0.01
    %v192 = vmul.f32 %v164, 0.01
    %v193 = vmul.f32 %v169, 0.01
    %v194 = vmul.f32 %v172, 0.01
    %v195 = vmul.f32 %v177, 0.01
    %v196 = vmul.f32 %v180, 0.01
    %v197 = vmul.f32 %v185, 0.01
    %v198 = vmul.f32 %v188, 0.01
    %v199 = vmax.f32 %v161, %v191
    %v200 = vmax.f32 %v164, %v192
    %v201 = vmax.f32 %v169, %v193
    %v202 = vmax.f32 %v172, %v194
    %v203 = vmax.f32 %v177, %v195
    %v204 = vmax.f32 %v180, %v196
    %v205 = vmax.f32 %v185, %v197
    %v206 = vmax.f32 %v188, %v198
    %v207 = vld [vmem:[%s2] sm:$0xf]
    %v208 = vld [vmem:[%s2 + $0x4] sm:$0xf]
    %v209 = vld [vmem:[%s2 + $0x8] sm:$0xf]
    %v210 = vld [vmem:[%s2 + $0xc] sm:$0xf]
    %v211 = vpack.c.bf16 %v200, %v199
    %v212 = vpack.c.bf16 %v202, %v201
    %v213 = vpack.c.bf16 %v204, %v203
    %v214 = vpack.c.bf16 %v206, %v205
    %216 = vset.pattern.permute.xlu0 0
    %217 = vperm.xlu0 %216, %v35
    %v218 = vpop.permute.xlu0 %217
    %221 = vset.pattern.permute.xlu0 0
    %222 = vperm.xlu0 %221, %v36
    %v223 = vpop.permute.xlu0 %222
    %226 = vset.pattern.permute.xlu0 0
    %227 = vperm.xlu0 %226, %v37
    %v228 = vpop.permute.xlu0 %227
    %231 = vset.pattern.permute.xlu0 0
    %232 = vperm.xlu0 %231, %v38
    %v233 = vpop.permute.xlu0 %232
    %v239 = vunpack.c.l.b16 %v207
    %v240 = vunpack.c.l.b16 %v208
    %v241 = vunpack.c.l.b16 %v209
    %v242 = vunpack.c.l.b16 %v210
    %v243 = vpack.c.b16 %v240, %v239
    %v244 = vpack.c.b16 %v242, %v241
    %vm245 = vcmask 523264
    %v247 = vsel %vm245, %v243, 0
    %v250 = vsel %vm245, %v244, 0
    %252 = vmatprep.subr.bf16.mxu0 0
    %253 = vmatpush1.bf16.msra.mxu0 0
    %254 = vmatprep.subr.bf16.mxu0 0
    %255 = vmatpush1.bf16.msra.mxu0 0
    %256 = vmatprep.subr.bf16.mxu0 0
    %257 = vmatpush1.bf16.msra.mxu0 0
    %258 = vmatprep.subr.bf16.mxu0 0
    %259 = vmatpush1.bf16.msra.mxu0 0
    %260 = vmatprep.subr.bf16.mxu0 0
    %261 = vmatpush1.bf16.msra.mxu0 %v214
    %262 = vmatprep.subr.bf16.mxu0 0
    %263 = vmatpush1.bf16.msra.mxu0 %v213
    %264 = vmatprep.subr.bf16.mxu0 0
    %265 = vmatpush1.bf16.msra.mxu0 %v212
    %266 = vmatprep.subr.bf16.mxu0 0
    %267 = vmatpush1.bf16.msra.mxu0 %v211
    %268 = vmatprep.subr.bf16.mxu0 0
    %269 = vmatpush2.bf16.msra.mxu0 0
    %270 = vmatprep.subr.bf16.mxu0 0
    %271 = vmatpush2.bf16.msra.mxu0 0
    %272 = vmatprep.subr.bf16.mxu0 0
    %273 = vmatpush2.bf16.msra.mxu0 0
    %274 = vmatprep.subr.bf16.mxu0 0
    %275 = vmatpush2.bf16.msra.mxu0 0
    %276 = vmatprep.subr.bf16.mxu0 0
    %277 = vmatpush2.bf16.msra.mxu0 0
    %278 = vmatprep.subr.bf16.mxu0 0
    %279 = vmatpush2.bf16.msra.mxu0 0
    %280 = vmatprep.subr.bf16.mxu0 0
    %281 = vmatpush2.bf16.msra.mxu0 0
    %282 = vmatprep.subr.bf16.mxu0 0
    %283 = vmatpush2.bf16.msra.mxu0 0
    %284 = vmatprep.mubr.bf16.mxu0 0
    %285 = vmatmul.mubr.bf16.gmra.mxu0 %v247
    %v286 = vpop.f32.mrf.mxu0
    %v287 = vadd.f32 %v218, %v286
    %v288 = vpop.f32.mrf.mxu0
    %v289 = vpop.f32.mrf.mxu0
    %v290 = vadd.f32 %v223, %v289
    %v291 = vpop.f32.mrf.mxu0
    %292 = vmatprep.mubr.bf16.mxu0 0
    %293 = vmatmul.mubr.bf16.gmra.mxu0 %v250
    %v294 = vpop.f32.mrf.mxu0
    %v295 = vadd.f32 %v228, %v294
    %v296 = vpop.f32.mrf.mxu0
    %v297 = vpop.f32.mrf.mxu0
    %v298 = vadd.f32 %v233, %v297
    %v299 = vpop.f32.mrf.mxu0
    %300 = vdwg.mxu0
    %v301 = vmul.f32 %v287, 0.01
    %v302 = vmul.f32 %v290, 0.01
    %v303 = vmul.f32 %v295, 0.01
    %v304 = vmul.f32 %v298, 0.01
    %v305 = vmax.f32 %v287, %v301
    %v306 = vmax.f32 %v290, %v302
    %v307 = vmax.f32 %v295, %v303
    %v308 = vmax.f32 %v298, %v304
    %v309 = vld [vmem:[%s3] sm:$0xf]
    %v310 = vld [vmem:[%s3 + $0x4] sm:$0xf]
    %v311 = vpack.c.bf16 %v306, %v305
    %v312 = vpack.c.bf16 %v308, %v307
    %314 = vset.pattern.permute.xlu0 0
    %315 = vperm.xlu0 %314, %v39
    %v316 = vpop.permute.xlu0 %315
    %319 = vset.pattern.permute.xlu0 0
    %320 = vperm.xlu0 %319, %v40
    %v321 = vpop.permute.xlu0 %320
    %v325 = vunpack.c.l.b16 %v309
    %v326 = vunpack.c.l.b16 %v310
    %v327 = vpack.c.b16 %v326, %v325
    %vm328 = vcmask 261120
    %v330 = vsel %vm328, %v327, 0
    %332 = vmatprep.subr.bf16.mxu0 0
    %333 = vmatpush1.bf16.msra.mxu0 0
    %334 = vmatprep.subr.bf16.mxu0 0
    %335 = vmatpush1.bf16.msra.mxu0 0
    %336 = vmatprep.subr.bf16.mxu0 0
    %337 = vmatpush1.bf16.msra.mxu0 0
    %338 = vmatprep.subr.bf16.mxu0 0
    %339 = vmatpush1.bf16.msra.mxu0 0
    %340 = vmatprep.subr.bf16.mxu0 0
    %341 = vmatpush1.bf16.msra.mxu0 0
    %342 = vmatprep.subr.bf16.mxu0 0
    %343 = vmatpush1.bf16.msra.mxu0 0
    %344 = vmatprep.subr.bf16.mxu0 0
    %345 = vmatpush1.bf16.msra.mxu0 %v312
    %346 = vmatprep.subr.bf16.mxu0 0
    %347 = vmatpush1.bf16.msra.mxu0 %v311
    %348 = vmatprep.subr.bf16.mxu0 0
    %349 = vmatpush2.bf16.msra.mxu0 0
    %350 = vmatprep.subr.bf16.mxu0 0
    %351 = vmatpush2.bf16.msra.mxu0 0
    %352 = vmatprep.subr.bf16.mxu0 0
    %353 = vmatpush2.bf16.msra.mxu0 0
    %354 = vmatprep.subr.bf16.mxu0 0
    %355 = vmatpush2.bf16.msra.mxu0 0
    %356 = vmatprep.subr.bf16.mxu0 0
    %357 = vmatpush2.bf16.msra.mxu0 0
    %358 = vmatprep.subr.bf16.mxu0 0
    %359 = vmatpush2.bf16.msra.mxu0 0
    %360 = vmatprep.subr.bf16.mxu0 0
    %361 = vmatpush2.bf16.msra.mxu0 0
    %362 = vmatprep.subr.bf16.mxu0 0
    %363 = vmatpush2.bf16.msra.mxu0 0
    %364 = vmatprep.mubr.bf16.mxu0 0
    %365 = vmatmul.mubr.bf16.gmra.mxu0 %v330
    %v366 = vpop.f32.mrf.mxu0
    %v367 = vadd.f32 %v316, %v366
    %v368 = vpop.f32.mrf.mxu0
    %v369 = vpop.f32.mrf.mxu0
    %v370 = vadd.f32 %v321, %v369
    %v371 = vpop.f32.mrf.mxu0
    %372 = vdwg.mxu0
    %v373 = vmul.f32 %v367, 0.01
    %v374 = vmul.f32 %v370, 0.01
    %v375 = vmax.f32 %v367, %v373
    %v376 = vmax.f32 %v370, %v374
    %v377 = vld [vmem:[%s4] sm:$0x1]
    %379 = vset.pattern.permute.xlu0 0
    %380 = vperm.xlu0 %379, %v41
    %v381 = vpop.permute.xlu0 %380
    %vm383 = vcmask 130048
    %v385 = vsel %vm383, %v377, 0
    %387 = vmatprep.subr.mxu0 0.0
    %388 = vmatpush1.msra.mxu0 0.0
    %389 = vmatprep.subr.mxu0 0.0
    %390 = vmatpush1.msra.mxu0 0.0
    %391 = vmatprep.subr.mxu0 0.0
    %392 = vmatpush1.msra.mxu0 0.0
    %393 = vmatprep.subr.mxu0 0.0
    %394 = vmatpush1.msra.mxu0 0.0
    %395 = vmatprep.subr.mxu0 0.0
    %396 = vmatpush1.msra.mxu0 0.0
    %397 = vmatprep.subr.mxu0 0.0
    %398 = vmatpush1.msra.mxu0 0.0
    %399 = vmatprep.subr.mxu0 0.0
    %400 = vmatpush1.msra.mxu0 0.0
    %401 = vmatprep.subr.mxu0 0.0
    %402 = vmatpush1.msra.mxu0 0.0
    %403 = vmatprep.subr.mxu0 0.0
    %404 = vmatpush1.msra.mxu0 0.0
    %405 = vmatprep.subr.mxu0 0.0
    %406 = vmatpush1.msra.mxu0 0.0
    %407 = vmatprep.subr.mxu0 0.0
    %408 = vmatpush1.msra.mxu0 0.0
    %409 = vmatprep.subr.mxu0 0.0
    %410 = vmatpush1.msra.mxu0 0.0
    %411 = vmatprep.subr.mxu0 0.0
    %412 = vmatpush1.msra.mxu0 0.0
    %413 = vmatprep.subr.mxu0 0.0
    %414 = vmatpush1.msra.mxu0 0.0
    %415 = vmatprep.subr.mxu0 0.0
    %416 = vmatpush1.msra.mxu0 %v376
    %417 = vmatprep.subr.mxu0 0.0
    %418 = vmatpush1.msra.mxu0 %v375
    %419 = vmatprep.subr.mxu0 0.0
    %420 = vmatpush2.msra.mxu0 0.0
    %421 = vmatprep.subr.mxu0 0.0
    %422 = vmatpush2.msra.mxu0 0.0
    %423 = vmatprep.subr.mxu0 0.0
    %424 = vmatpush2.msra.mxu0 0.0
    %425 = vmatprep.subr.mxu0 0.0
    %426 = vmatpush2.msra.mxu0 0.0
    %427 = vmatprep.subr.mxu0 0.0
    %428 = vmatpush2.msra.mxu0 0.0
    %429 = vmatprep.subr.mxu0 0.0
    %430 = vmatpush2.msra.mxu0 0.0
    %431 = vmatprep.subr.mxu0 0.0
    %432 = vmatpush2.msra.mxu0 0.0
    %433 = vmatprep.subr.mxu0 0.0
    %434 = vmatpush2.msra.mxu0 0.0
    %435 = vmatprep.subr.mxu0 0.0
    %436 = vmatpush2.msra.mxu0 0.0
    %437 = vmatprep.subr.mxu0 0.0
    %438 = vmatpush2.msra.mxu0 0.0
    %439 = vmatprep.subr.mxu0 0.0
    %440 = vmatpush2.msra.mxu0 0.0
    %441 = vmatprep.subr.mxu0 0.0
    %442 = vmatpush2.msra.mxu0 0.0
    %443 = vmatprep.subr.mxu0 0.0
    %444 = vmatpush2.msra.mxu0 0.0
    %445 = vmatprep.subr.mxu0 0.0
    %446 = vmatpush2.msra.mxu0 0.0
    %447 = vmatprep.subr.mxu0 0.0
    %448 = vmatpush2.msra.mxu0 0.0
    %449 = vmatprep.subr.mxu0 0.0
    %450 = vmatpush2.msra.mxu0 0.0
    %451 = vmatprep.mubr.f32.mxu0 0.0
    %452 = vmatmul.mubr.f32.gmra.mxu0 %v385
    %v453 = vpop.f32.mrf.mxu0
    %v454 = vadd.f32 %v381, %v453
    %v455 = vpop.f32.mrf.mxu0
    %456 = vdwg.mxu0
    %vm457 = vcmask 57344
    %458 = vst.msk [vmem:[#allocation2] sm:$0x1] %vm457, %v454
    // Predicated region
    $region26: #{bayesian_nn_forward.1} parent=1 // pred_check
      _
    $region27: #{bayesian_nn_forward.1} parent=1 // pred_check_branch
      %460 = sbr.rel (0) target = $region29
    $region28: #{bayesian_nn_forward.1} parent=1 // pred_region
      %s462 = ssub.s32 16, 16
      %463 = vsyncadd [#allocation3], %s462
      %s465 = sshll.u32 [#allocation2], 4
      %s466 = int_to_ptr.vmem [resolvable:$true] %s465
      %468 = dma.vmem_to_hbm [thread:$0]  %s466, 16, %s6, [#allocation3]
    $region29: #{bayesian_nn_forward.1} parent=1 // pred_fallthru
      _
    // Predicated region
    $region30: #{bayesian_nn_forward.1} parent=1 // pred_check
      _
    $region31: #{bayesian_nn_forward.1} parent=1 // pred_check_branch
      %470 = sbr.rel (0) target = $region33
    $region32: #{bayesian_nn_forward.1} parent=1 // pred_region
      %471 = dma.done [#allocation3], 16
    $region33: #{bayesian_nn_forward.1} parent=1 // pred_fallthru
      _
    %472 = vsyncpa [#allocation3], 1

</llo_original>
